<compile_context>
chip_gen: v5e
topology: v5e:2x2
jax: 0.10.0
libtpu: 0.0.40
codegen_flags: <defaults>
</compile_context>

<pallas_src>
import functools

import jax
import jax.numpy as jnp
from jax.experimental import pallas as pl
from jax.experimental.pallas import tpu as pltpu  # noqa: F401  (kept for TPU-specific extensions)

LANE = 128  # TPU lane width; output positions are lane-padded to this for a dense store


def _hardsigmoid(x):
    # PyTorch F.hardsigmoid: relu6(x + 3) / 6
    return jnp.clip((x + 3.0) / 6.0, 0.0, 1.0)


def _hardtanh(x):
    # PyTorch F.hardtanh, default bounds [-1, 1]
    return jnp.clip(x, -1.0, 1.0)


def _leaky_relu(x, slope=0.01):
    # PyTorch nn.LeakyReLU default negative_slope = 0.01
    return jnp.where(x > 0, x, slope * x)


def predictor_kernel(gx0_ref, hraw_ref, w1_ref, b1_ref, w2_ref, b2_ref,
                     whh_ref, wfold_ref, bfold_ref, wpos_ref, bpos_ref,
                     out_ref, *, fut_len):
    B, H = hraw_ref.shape
    G = 4 * H

    # mapping MLP (Linear -> LeakyReLU -> Linear); produces the initial hidden state
    m = jnp.dot(hraw_ref[...], w1_ref[...],
                preferred_element_type=jnp.float32) + b1_ref[...]
    m = _leaky_relu(m)
    h = jnp.dot(m, w2_ref[...], preferred_element_type=jnp.float32) + b2_ref[...]
    c = jnp.zeros_like(h)

    whh = whh_ref[...]            # (H, 4H)   step-0 hidden->gates
    wfold = wfold_ref[...]        # (H, 4H)   folded (W_pos -> W_ih) + W_hh for t >= 1
    gx0 = gx0_ref[...]            # (B, 4H)   x0 @ W_ih^T + b_ih + b_hh (precomputed)
    # Hoist the bias broadcast out of the unrolled loop.
    bfold = jnp.broadcast_to(bfold_ref[...], (B, G))

    hs = []
    for t in range(fut_len):       # fully unrolled: h, c stay in vregs
        if t == 0:
            gates = gx0 + jnp.dot(h, whh, preferred_element_type=jnp.float32)
        else:
            gates = bfold + jnp.dot(h, wfold, preferred_element_type=jnp.float32)
        i_ = _hardsigmoid(gates[:, 0 * H:1 * H])
        f_ = _hardsigmoid(gates[:, 1 * H:2 * H])
        g_ = _hardtanh(gates[:, 2 * H:3 * H])
        o_ = _hardsigmoid(gates[:, 3 * H:4 * H])
        c = f_ * c + i_ * g_
        h = o_ * _hardtanh(c)
        hs.append(h)

    # pred_hidden2pos for all steps in one MXU pass + one bulk lane-dense store.
    hall = jnp.concatenate(hs, axis=0)                         # (T*B, H)
    pos = jnp.dot(hall, wpos_ref[...],
                  preferred_element_type=jnp.float32) + bpos_ref[...]   # (T*B, 128)
    out_ref[...] = pos.reshape(out_ref.shape).astype(out_ref.dtype)


def predictor_forward(obs_traj_rel, pred_lstm_hidden, params, *,
                      obs_len, fut_len, n_coordinates):
    """Eval-mode Predictor.forward. Returns (fut_len, K, N, n_coordinates)."""
    f32 = jnp.float32
    C = n_coordinates
    K, N, H = pred_lstm_hidden.shape
    B = K * N
    G = 4 * H
    M = params["map_w1"].shape[0]         # mapping hidden width (hidden_dims[0])
    CP = LANE

    # input_t = obs_traj_rel[obs_len-1, :, :C].repeat(K, 1, 1), flattened to (B, C)
    x0 = jnp.tile(obs_traj_rel[obs_len - 1, :, :C][None], (K, 1, 1))
    x0 = x0.reshape(B, C).astype(f32)
    hraw = pred_lstm_hidden.reshape(B, H).astype(f32)

    # --- Glue: pre-transpose weights, pre-sum biases, fold W_pos into gates ---
    w1t = params["map_w1"].astype(f32).T                      # (H, M)
    b1 = params["map_b1"].astype(f32).reshape(1, M)
    w2t = params["map_w2"].astype(f32).T                      # (M, H)
    b2 = params["map_b2"].astype(f32).reshape(1, H)

    wih_t = params["w_ih"].astype(f32).T                      # (C, 4H)
    whh_t = params["w_hh"].astype(f32).T                      # (H, 4H)
    wpos_t = params["w_pos"].astype(f32).T                    # (H, C)
    bpos = params["b_pos"].astype(f32)                        # (C,)
    b_sum = (params["b_ih"] + params["b_hh"]).astype(f32)     # (4H,)

    # step-0 input contribution, computed once off the serial path
    gx0 = x0 @ wih_t + b_sum[None, :]                         # (B, 4H)
    # fold pred_hidden2pos into the gate weights for t >= 1
    w_fold = wpos_t @ wih_t + whh_t                           # (H, 4H)
    b_fold = (bpos @ wih_t + b_sum).reshape(1, G)             # (1, 4H)

    # lane-pad W_pos / b_pos so the single output store is a dense 128-lane block
    wpos_p = jnp.zeros((H, CP), f32).at[:, :C].set(wpos_t)
    bpos_p = jnp.zeros((1, CP), f32).at[:, :C].set(bpos.reshape(1, C))

    kernel = functools.partial(predictor_kernel, fut_len=fut_len)
    out = pl.pallas_call(
        kernel,
        out_shape=jax.ShapeDtypeStruct((fut_len, B, CP), f32),
        # no grid: single invocation, whole (tiny) arrays VMEM-resident
    )(gx0, hraw, w1t, b1, w2t, b2, whh_t, w_fold, b_fold, wpos_p, bpos_p)

    # (T, B, 128) -> (T, K, N, C)
    return out[:, :, :C].reshape(fut_len, K, N, C)


def predictor_ref(obs_traj_rel, pred_lstm_hidden, params, *,
                  obs_len, fut_len, n_coordinates):
    """Pure-JAX reference matching the PyTorch eval-mode forward."""
    C = n_coordinates
    K, N, H = pred_lstm_hidden.shape
    x = jnp.tile(obs_traj_rel[obs_len - 1, :, :C][None], (K, 1, 1))   # (K, N, C)
    h = pred_lstm_hidden @ params["map_w1"].T + params["map_b1"]
    h = _leaky_relu(h)
    h = h @ params["map_w2"].T + params["map_b2"]
    c = jnp.zeros_like(h)
    outs = []
    for _ in range(fut_len):
        gates = (x @ params["w_ih"].T + params["b_ih"]
                 + h @ params["w_hh"].T + params["b_hh"])
        i_, f_, g_, o_ = jnp.split(gates, 4, axis=-1)
        i_ = _hardsigmoid(i_)
        f_ = _hardsigmoid(f_)
        g_ = _hardtanh(g_)
        o_ = _hardsigmoid(o_)
        c = f_ * c + i_ * g_
        h = o_ * _hardtanh(c)
        pos = h @ params["w_pos"].T + params["b_pos"]
        x = pos
        outs.append(pos)
    return jnp.stack(outs)   # (T, K, N, C)


if __name__ == "__main__":
    obs_len, fut_len = 8, 8
    n_coordinates = 2
    s_dim, z_dim = 16, 16
    H = s_dim + z_dim              # pred_lstm_hidden_size = 32
    hidden_dims = [32]
    K, N = 2, 4                    # samples x pedestrians -> B = 8

    key = jax.random.PRNGKey(0)
    keys = jax.random.split(key, 10)

    obs_traj_rel = jax.random.normal(keys[0], (obs_len, N, n_coordinates), jnp.float32)
    fut_traj_rel = jax.random.normal(keys[1], (fut_len, N, n_coordinates), jnp.float32)  # unused (eval)
    seq_start_end = jnp.array([[0, N]], jnp.int32)                                       # unused by forward
    pred_lstm_hidden = jax.random.normal(keys[2], (K, N, H), jnp.float32)

    params = {
        # mapping: Linear(H, 32) + LeakyReLU, Linear(32, H)  (normal(0, 0.1), zero bias)
        "map_w1": 0.1 * jax.random.normal(keys[3], (hidden_dims[0], H), jnp.float32),
        "map_b1": jnp.zeros((hidden_dims[0],), jnp.float32),
        "map_w2": 0.1 * jax.random.normal(keys[4], (H, hidden_dims[0]), jnp.float32),
        "map_b2": jnp.zeros((H,), jnp.float32),
        # custom LSTMCell params (torch.randn init; scaled to avoid full gate saturation)
        "w_ih": 0.2 * jax.random.normal(keys[5], (4 * H, n_coordinates), jnp.float32),
        "w_hh": 0.2 * jax.random.normal(keys[6], (4 * H, H), jnp.float32),
        "b_ih": 0.2 * jax.random.normal(keys[7], (4 * H,), jnp.float32),
        "b_hh": 0.2 * jax.random.normal(keys[8], (4 * H,), jnp.float32),
        # pred_hidden2pos: Linear(H, n_coordinates)
        "w_pos": 0.1 * jax.random.normal(keys[9], (n_coordinates, H), jnp.float32),
        "b_pos": jnp.zeros((n_coordinates,), jnp.float32),
    }

    out = predictor_forward(obs_traj_rel, pred_lstm_hidden, params,
                            obs_len=obs_len, fut_len=fut_len,
                            n_coordinates=n_coordinates)
    jax.block_until_ready(out)

    ref = predictor_ref(obs_traj_rel, pred_lstm_hidden, params,
                        obs_len=obs_len, fut_len=fut_len,
                        n_coordinates=n_coordinates)
    assert out.shape == (fut_len, K, N, n_coordinates), out.shape
    assert jnp.allclose(out, ref, atol=1e-4, rtol=1e-4), \
        f"max abs err = {float(jnp.max(jnp.abs(out - ref)))}"

    print("KERNEL_OK")
</pallas_src>

<mosaic_0001>
module attributes {stable_mosaic.version = 11 : i64} {
  func.func @predictor_kernel(%arg0: memref<8x128xf32, #tpu.memory_space<vmem>>, %arg1: memref<8x32xf32, #tpu.memory_space<vmem>>, %arg2: memref<32x32xf32, #tpu.memory_space<vmem>>, %arg3: memref<1x32xf32, #tpu.memory_space<vmem>>, %arg4: memref<32x32xf32, #tpu.memory_space<vmem>>, %arg5: memref<1x32xf32, #tpu.memory_space<vmem>>, %arg6: memref<32x128xf32, #tpu.memory_space<vmem>>, %arg7: memref<32x128xf32, #tpu.memory_space<vmem>>, %arg8: memref<1x128xf32, #tpu.memory_space<vmem>>, %arg9: memref<32x128xf32, #tpu.memory_space<vmem>>, %arg10: memref<1x128xf32, #tpu.memory_space<vmem>>, %arg11: memref<8x8x128xf32, #tpu.memory_space<vmem>>) attributes {dimension_semantics = [], scalar_prefetch = 0 : i64, scratch_operands = 0 : i64, tpu.core_type = #tpu.core_type<tc>} {
    %c0 = arith.constant 0 : index
    %c0_0 = arith.constant 0 : index
    %0 = vector.load %arg1[%c0, %c0_0] : memref<8x32xf32, #tpu.memory_space<vmem>>, vector<8x32xf32>
    %c0_1 = arith.constant 0 : index
    %c0_2 = arith.constant 0 : index
    %1 = vector.load %arg2[%c0_1, %c0_2] : memref<32x32xf32, #tpu.memory_space<vmem>>, vector<32x32xf32>
    %cst = arith.constant dense<0.000000e+00> : vector<8x32xf32>
    %2 = tpu.matmul %0, %1, %cst {dimension_numbers = #tpu.dot_dimension_numbers<[1], [0], [0], [1], [0, 0, 1, 1], [], []>} : vector<8x32xf32>, vector<32x32xf32>, vector<8x32xf32> -> vector<8x32xf32>
    %c0_3 = arith.constant 0 : index
    %c0_4 = arith.constant 0 : index
    %3 = vector.load %arg3[%c0_3, %c0_4] : memref<1x32xf32, #tpu.memory_space<vmem>>, vector<1x32xf32>
    %4 = vector.broadcast %3 : vector<1x32xf32> to vector<8x32xf32>
    %5 = arith.addf %2, %4 : vector<8x32xf32>
    %cst_5 = arith.constant 0.000000e+00 : f32
    %6 = vector.broadcast %cst_5 : f32 to vector<8x32xf32>
    %7 = arith.cmpf ogt, %5, %6 : vector<8x32xf32>
    %cst_6 = arith.constant 0.00999999977 : f32
    %8 = vector.broadcast %cst_6 : f32 to vector<8x32xf32>
    %9 = arith.mulf %8, %5 : vector<8x32xf32>
    %10 = arith.select %7, %5, %9 : vector<8x32xi1>, vector<8x32xf32>
    %c0_7 = arith.constant 0 : index
    %c0_8 = arith.constant 0 : index
    %11 = vector.load %arg4[%c0_7, %c0_8] : memref<32x32xf32, #tpu.memory_space<vmem>>, vector<32x32xf32>
    %cst_9 = arith.constant dense<0.000000e+00> : vector<8x32xf32>
    %12 = tpu.matmul %10, %11, %cst_9 {dimension_numbers = #tpu.dot_dimension_numbers<[1], [0], [0], [1], [0, 0, 1, 1], [], []>} : vector<8x32xf32>, vector<32x32xf32>, vector<8x32xf32> -> vector<8x32xf32>
    %c0_10 = arith.constant 0 : index
    %c0_11 = arith.constant 0 : index
    %13 = vector.load %arg5[%c0_10, %c0_11] : memref<1x32xf32, #tpu.memory_space<vmem>>, vector<1x32xf32>
    %14 = vector.broadcast %13 : vector<1x32xf32> to vector<8x32xf32>
    %15 = arith.addf %12, %14 : vector<8x32xf32>
    %cst_12 = arith.constant 0.000000e+00 : f32
    %16 = vector.broadcast %cst_12 : f32 to vector<8x32xf32>
    %c0_13 = arith.constant 0 : index
    %c0_14 = arith.constant 0 : index
    %17 = vector.load %arg6[%c0_13, %c0_14] : memref<32x128xf32, #tpu.memory_space<vmem>>, vector<32x128xf32>
    %c0_15 = arith.constant 0 : index
    %c0_16 = arith.constant 0 : index
    %18 = vector.load %arg7[%c0_15, %c0_16] : memref<32x128xf32, #tpu.memory_space<vmem>>, vector<32x128xf32>
    %c0_17 = arith.constant 0 : index
    %c0_18 = arith.constant 0 : index
    %19 = vector.load %arg0[%c0_17, %c0_18] : memref<8x128xf32, #tpu.memory_space<vmem>>, vector<8x128xf32>
    %c0_19 = arith.constant 0 : index
    %c0_20 = arith.constant 0 : index
    %20 = vector.load %arg8[%c0_19, %c0_20] : memref<1x128xf32, #tpu.memory_space<vmem>>, vector<1x128xf32>
    %21 = vector.shape_cast %20 : vector<1x128xf32> to vector<1x128xf32>
    %22 = vector.broadcast %21 : vector<1x128xf32> to vector<8x128xf32>
    %cst_21 = arith.constant dense<0.000000e+00> : vector<8x128xf32>
    %23 = tpu.matmul %15, %17, %cst_21 {dimension_numbers = #tpu.dot_dimension_numbers<[1], [0], [0], [1], [0, 0, 1, 1], [], []>} : vector<8x32xf32>, vector<32x128xf32>, vector<8x128xf32> -> vector<8x128xf32>
    %24 = arith.addf %19, %23 : vector<8x128xf32>
    %25 = vector.extract_strided_slice %24 {offsets = [0, 0], sizes = [8, 32], strides = [1, 1]} : vector<8x128xf32> to vector<8x32xf32>
    %cst_22 = arith.constant 3.000000e+00 : f32
    %26 = vector.broadcast %cst_22 : f32 to vector<8x32xf32>
    %27 = arith.addf %25, %26 : vector<8x32xf32>
    %cst_23 = arith.constant 6.000000e+00 : f32
    %28 = vector.broadcast %cst_23 : f32 to vector<8x32xf32>
    %29 = arith.divf %27, %28 : vector<8x32xf32>
    %cst_24 = arith.constant 0.000000e+00 : f32
    %cst_25 = arith.constant 1.000000e+00 : f32
    %30 = vector.broadcast %cst_24 : f32 to vector<8x32xf32>
    %31 = arith.maximumf %30, %29 : vector<8x32xf32>
    %32 = vector.broadcast %cst_25 : f32 to vector<8x32xf32>
    %33 = arith.minimumf %32, %31 : vector<8x32xf32>
    %34 = vector.extract_strided_slice %24 {offsets = [0, 32], sizes = [8, 32], strides = [1, 1]} : vector<8x128xf32> to vector<8x32xf32>
    %cst_26 = arith.constant 3.000000e+00 : f32
    %35 = vector.broadcast %cst_26 : f32 to vector<8x32xf32>
    %36 = arith.addf %34, %35 : vector<8x32xf32>
    %cst_27 = arith.constant 6.000000e+00 : f32
    %37 = vector.broadcast %cst_27 : f32 to vector<8x32xf32>
    %38 = arith.divf %36, %37 : vector<8x32xf32>
    %cst_28 = arith.constant 0.000000e+00 : f32
    %cst_29 = arith.constant 1.000000e+00 : f32
    %39 = vector.broadcast %cst_28 : f32 to vector<8x32xf32>
    %40 = arith.maximumf %39, %38 : vector<8x32xf32>
    %41 = vector.broadcast %cst_29 : f32 to vector<8x32xf32>
    %42 = arith.minimumf %41, %40 : vector<8x32xf32>
    %43 = vector.extract_strided_slice %24 {offsets = [0, 64], sizes = [8, 32], strides = [1, 1]} : vector<8x128xf32> to vector<8x32xf32>
    %cst_30 = arith.constant -1.000000e+00 : f32
    %cst_31 = arith.constant 1.000000e+00 : f32
    %44 = vector.broadcast %cst_30 : f32 to vector<8x32xf32>
    %45 = arith.maximumf %44, %43 : vector<8x32xf32>
    %46 = vector.broadcast %cst_31 : f32 to vector<8x32xf32>
    %47 = arith.minimumf %46, %45 : vector<8x32xf32>
    %48 = vector.extract_strided_slice %24 {offsets = [0, 96], sizes = [8, 32], strides = [1, 1]} : vector<8x128xf32> to vector<8x32xf32>
    %cst_32 = arith.constant 3.000000e+00 : f32
    %49 = vector.broadcast %cst_32 : f32 to vector<8x32xf32>
    %50 = arith.addf %48, %49 : vector<8x32xf32>
    %cst_33 = arith.constant 6.000000e+00 : f32
    %51 = vector.broadcast %cst_33 : f32 to vector<8x32xf32>
    %52 = arith.divf %50, %51 : vector<8x32xf32>
    %cst_34 = arith.constant 0.000000e+00 : f32
    %cst_35 = arith.constant 1.000000e+00 : f32
    %53 = vector.broadcast %cst_34 : f32 to vector<8x32xf32>
    %54 = arith.maximumf %53, %52 : vector<8x32xf32>
    %55 = vector.broadcast %cst_35 : f32 to vector<8x32xf32>
    %56 = arith.minimumf %55, %54 : vector<8x32xf32>
    %57 = arith.mulf %42, %16 : vector<8x32xf32>
    %58 = arith.mulf %33, %47 : vector<8x32xf32>
    %59 = arith.addf %57, %58 : vector<8x32xf32>
    %cst_36 = arith.constant -1.000000e+00 : f32
    %cst_37 = arith.constant 1.000000e+00 : f32
    %60 = vector.broadcast %cst_36 : f32 to vector<8x32xf32>
    %61 = arith.maximumf %60, %59 : vector<8x32xf32>
    %62 = vector.broadcast %cst_37 : f32 to vector<8x32xf32>
    %63 = arith.minimumf %62, %61 : vector<8x32xf32>
    %64 = arith.mulf %56, %63 : vector<8x32xf32>
    %cst_38 = arith.constant dense<0.000000e+00> : vector<8x128xf32>
    %65 = tpu.matmul %64, %18, %cst_38 {dimension_numbers = #tpu.dot_dimension_numbers<[1], [0], [0], [1], [0, 0, 1, 1], [], []>} : vector<8x32xf32>, vector<32x128xf32>, vector<8x128xf32> -> vector<8x128xf32>
    %66 = arith.addf %22, %65 : vector<8x128xf32>
    %67 = vector.extract_strided_slice %66 {offsets = [0, 0], sizes = [8, 32], strides = [1, 1]} : vector<8x128xf32> to vector<8x32xf32>
    %cst_39 = arith.constant 3.000000e+00 : f32
    %68 = vector.broadcast %cst_39 : f32 to vector<8x32xf32>
    %69 = arith.addf %67, %68 : vector<8x32xf32>
    %cst_40 = arith.constant 6.000000e+00 : f32
    %70 = vector.broadcast %cst_40 : f32 to vector<8x32xf32>
    %71 = arith.divf %69, %70 : vector<8x32xf32>
    %cst_41 = arith.constant 0.000000e+00 : f32
    %cst_42 = arith.constant 1.000000e+00 : f32
    %72 = vector.broadcast %cst_41 : f32 to vector<8x32xf32>
    %73 = arith.maximumf %72, %71 : vector<8x32xf32>
    %74 = vector.broadcast %cst_42 : f32 to vector<8x32xf32>
    %75 = arith.minimumf %74, %73 : vector<8x32xf32>
    %76 = vector.extract_strided_slice %66 {offsets = [0, 32], sizes = [8, 32], strides = [1, 1]} : vector<8x128xf32> to vector<8x32xf32>
    %cst_43 = arith.constant 3.000000e+00 : f32
    %77 = vector.broadcast %cst_43 : f32 to vector<8x32xf32>
    %78 = arith.addf %76, %77 : vector<8x32xf32>
    %cst_44 = arith.constant 6.000000e+00 : f32
    %79 = vector.broadcast %cst_44 : f32 to vector<8x32xf32>
    %80 = arith.divf %78, %79 : vector<8x32xf32>
    %cst_45 = arith.constant 0.000000e+00 : f32
    %cst_46 = arith.constant 1.000000e+00 : f32
    %81 = vector.broadcast %cst_45 : f32 to vector<8x32xf32>
    %82 = arith.maximumf %81, %80 : vector<8x32xf32>
    %83 = vector.broadcast %cst_46 : f32 to vector<8x32xf32>
    %84 = arith.minimumf %83, %82 : vector<8x32xf32>
    %85 = vector.extract_strided_slice %66 {offsets = [0, 64], sizes = [8, 32], strides = [1, 1]} : vector<8x128xf32> to vector<8x32xf32>
    %cst_47 = arith.constant -1.000000e+00 : f32
    %cst_48 = arith.constant 1.000000e+00 : f32
    %86 = vector.broadcast %cst_47 : f32 to vector<8x32xf32>
    %87 = arith.maximumf %86, %85 : vector<8x32xf32>
    %88 = vector.broadcast %cst_48 : f32 to vector<8x32xf32>
    %89 = arith.minimumf %88, %87 : vector<8x32xf32>
    %90 = vector.extract_strided_slice %66 {offsets = [0, 96], sizes = [8, 32], strides = [1, 1]} : vector<8x128xf32> to vector<8x32xf32>
    %cst_49 = arith.constant 3.000000e+00 : f32
    %91 = vector.broadcast %cst_49 : f32 to vector<8x32xf32>
    %92 = arith.addf %90, %91 : vector<8x32xf32>
    %cst_50 = arith.constant 6.000000e+00 : f32
    %93 = vector.broadcast %cst_50 : f32 to vector<8x32xf32>
    %94 = arith.divf %92, %93 : vector<8x32xf32>
    %cst_51 = arith.constant 0.000000e+00 : f32
    %cst_52 = arith.constant 1.000000e+00 : f32
    %95 = vector.broadcast %cst_51 : f32 to vector<8x32xf32>
    %96 = arith.maximumf %95, %94 : vector<8x32xf32>
    %97 = vector.broadcast %cst_52 : f32 to vector<8x32xf32>
    %98 = arith.minimumf %97, %96 : vector<8x32xf32>
    %99 = arith.mulf %84, %59 : vector<8x32xf32>
    %100 = arith.mulf %75, %89 : vector<8x32xf32>
    %101 = arith.addf %99, %100 : vector<8x32xf32>
    %cst_53 = arith.constant -1.000000e+00 : f32
    %cst_54 = arith.constant 1.000000e+00 : f32
    %102 = vector.broadcast %cst_53 : f32 to vector<8x32xf32>
    %103 = arith.maximumf %102, %101 : vector<8x32xf32>
    %104 = vector.broadcast %cst_54 : f32 to vector<8x32xf32>
    %105 = arith.minimumf %104, %103 : vector<8x32xf32>
    %106 = arith.mulf %98, %105 : vector<8x32xf32>
    %cst_55 = arith.constant dense<0.000000e+00> : vector<8x128xf32>
    %107 = tpu.matmul %106, %18, %cst_55 {dimension_numbers = #tpu.dot_dimension_numbers<[1], [0], [0], [1], [0, 0, 1, 1], [], []>} : vector<8x32xf32>, vector<32x128xf32>, vector<8x128xf32> -> vector<8x128xf32>
    %108 = arith.addf %22, %107 : vector<8x128xf32>
    %109 = vector.extract_strided_slice %108 {offsets = [0, 0], sizes = [8, 32], strides = [1, 1]} : vector<8x128xf32> to vector<8x32xf32>
    %cst_56 = arith.constant 3.000000e+00 : f32
    %110 = vector.broadcast %cst_56 : f32 to vector<8x32xf32>
    %111 = arith.addf %109, %110 : vector<8x32xf32>
    %cst_57 = arith.constant 6.000000e+00 : f32
    %112 = vector.broadcast %cst_57 : f32 to vector<8x32xf32>
    %113 = arith.divf %111, %112 : vector<8x32xf32>
    %cst_58 = arith.constant 0.000000e+00 : f32
    %cst_59 = arith.constant 1.000000e+00 : f32
    %114 = vector.broadcast %cst_58 : f32 to vector<8x32xf32>
    %115 = arith.maximumf %114, %113 : vector<8x32xf32>
    %116 = vector.broadcast %cst_59 : f32 to vector<8x32xf32>
    %117 = arith.minimumf %116, %115 : vector<8x32xf32>
    %118 = vector.extract_strided_slice %108 {offsets = [0, 32], sizes = [8, 32], strides = [1, 1]} : vector<8x128xf32> to vector<8x32xf32>
    %cst_60 = arith.constant 3.000000e+00 : f32
    %119 = vector.broadcast %cst_60 : f32 to vector<8x32xf32>
    %120 = arith.addf %118, %119 : vector<8x32xf32>
    %cst_61 = arith.constant 6.000000e+00 : f32
    %121 = vector.broadcast %cst_61 : f32 to vector<8x32xf32>
    %122 = arith.divf %120, %121 : vector<8x32xf32>
    %cst_62 = arith.constant 0.000000e+00 : f32
    %cst_63 = arith.constant 1.000000e+00 : f32
    %123 = vector.broadcast %cst_62 : f32 to vector<8x32xf32>
    %124 = arith.maximumf %123, %122 : vector<8x32xf32>
    %125 = vector.broadcast %cst_63 : f32 to vector<8x32xf32>
    %126 = arith.minimumf %125, %124 : vector<8x32xf32>
    %127 = vector.extract_strided_slice %108 {offsets = [0, 64], sizes = [8, 32], strides = [1, 1]} : vector<8x128xf32> to vector<8x32xf32>
    %cst_64 = arith.constant -1.000000e+00 : f32
    %cst_65 = arith.constant 1.000000e+00 : f32
    %128 = vector.broadcast %cst_64 : f32 to vector<8x32xf32>
    %129 = arith.maximumf %128, %127 : vector<8x32xf32>
    %130 = vector.broadcast %cst_65 : f32 to vector<8x32xf32>
    %131 = arith.minimumf %130, %129 : vector<8x32xf32>
    %132 = vector.extract_strided_slice %108 {offsets = [0, 96], sizes = [8, 32], strides = [1, 1]} : vector<8x128xf32> to vector<8x32xf32>
    %cst_66 = arith.constant 3.000000e+00 : f32
    %133 = vector.broadcast %cst_66 : f32 to vector<8x32xf32>
    %134 = arith.addf %132, %133 : vector<8x32xf32>
    %cst_67 = arith.constant 6.000000e+00 : f32
    %135 = vector.broadcast %cst_67 : f32 to vector<8x32xf32>
    %136 = arith.divf %134, %135 : vector<8x32xf32>
    %cst_68 = arith.constant 0.000000e+00 : f32
    %cst_69 = arith.constant 1.000000e+00 : f32
    %137 = vector.broadcast %cst_68 : f32 to vector<8x32xf32>
    %138 = arith.maximumf %137, %136 : vector<8x32xf32>
    %139 = vector.broadcast %cst_69 : f32 to vector<8x32xf32>
    %140 = arith.minimumf %139, %138 : vector<8x32xf32>
    %141 = arith.mulf %126, %101 : vector<8x32xf32>
    %142 = arith.mulf %117, %131 : vector<8x32xf32>
    %143 = arith.addf %141, %142 : vector<8x32xf32>
    %cst_70 = arith.constant -1.000000e+00 : f32
    %cst_71 = arith.constant 1.000000e+00 : f32
    %144 = vector.broadcast %cst_70 : f32 to vector<8x32xf32>
    %145 = arith.maximumf %144, %143 : vector<8x32xf32>
    %146 = vector.broadcast %cst_71 : f32 to vector<8x32xf32>
    %147 = arith.minimumf %146, %145 : vector<8x32xf32>
    %148 = arith.mulf %140, %147 : vector<8x32xf32>
    %cst_72 = arith.constant dense<0.000000e+00> : vector<8x128xf32>
    %149 = tpu.matmul %148, %18, %cst_72 {dimension_numbers = #tpu.dot_dimension_numbers<[1], [0], [0], [1], [0, 0, 1, 1], [], []>} : vector<8x32xf32>, vector<32x128xf32>, vector<8x128xf32> -> vector<8x128xf32>
    %150 = arith.addf %22, %149 : vector<8x128xf32>
    %151 = vector.extract_strided_slice %150 {offsets = [0, 0], sizes = [8, 32], strides = [1, 1]} : vector<8x128xf32> to vector<8x32xf32>
    %cst_73 = arith.constant 3.000000e+00 : f32
    %152 = vector.broadcast %cst_73 : f32 to vector<8x32xf32>
    %153 = arith.addf %151, %152 : vector<8x32xf32>
    %cst_74 = arith.constant 6.000000e+00 : f32
    %154 = vector.broadcast %cst_74 : f32 to vector<8x32xf32>
    %155 = arith.divf %153, %154 : vector<8x32xf32>
    %cst_75 = arith.constant 0.000000e+00 : f32
    %cst_76 = arith.constant 1.000000e+00 : f32
    %156 = vector.broadcast %cst_75 : f32 to vector<8x32xf32>
    %157 = arith.maximumf %156, %155 : vector<8x32xf32>
    %158 = vector.broadcast %cst_76 : f32 to vector<8x32xf32>
    %159 = arith.minimumf %158, %157 : vector<8x32xf32>
    %160 = vector.extract_strided_slice %150 {offsets = [0, 32], sizes = [8, 32], strides = [1, 1]} : vector<8x128xf32> to vector<8x32xf32>
    %cst_77 = arith.constant 3.000000e+00 : f32
    %161 = vector.broadcast %cst_77 : f32 to vector<8x32xf32>
    %162 = arith.addf %160, %161 : vector<8x32xf32>
    %cst_78 = arith.constant 6.000000e+00 : f32
    %163 = vector.broadcast %cst_78 : f32 to vector<8x32xf32>
    %164 = arith.divf %162, %163 : vector<8x32xf32>
    %cst_79 = arith.constant 0.000000e+00 : f32
    %cst_80 = arith.constant 1.000000e+00 : f32
    %165 = vector.broadcast %cst_79 : f32 to vector<8x32xf32>
    %166 = arith.maximumf %165, %164 : vector<8x32xf32>
    %167 = vector.broadcast %cst_80 : f32 to vector<8x32xf32>
    %168 = arith.minimumf %167, %166 : vector<8x32xf32>
    %169 = vector.extract_strided_slice %150 {offsets = [0, 64], sizes = [8, 32], strides = [1, 1]} : vector<8x128xf32> to vector<8x32xf32>
    %cst_81 = arith.constant -1.000000e+00 : f32
    %cst_82 = arith.constant 1.000000e+00 : f32
    %170 = vector.broadcast %cst_81 : f32 to vector<8x32xf32>
    %171 = arith.maximumf %170, %169 : vector<8x32xf32>
    %172 = vector.broadcast %cst_82 : f32 to vector<8x32xf32>
    %173 = arith.minimumf %172, %171 : vector<8x32xf32>
    %174 = vector.extract_strided_slice %150 {offsets = [0, 96], sizes = [8, 32], strides = [1, 1]} : vector<8x128xf32> to vector<8x32xf32>
    %cst_83 = arith.constant 3.000000e+00 : f32
    %175 = vector.broadcast %cst_83 : f32 to vector<8x32xf32>
    %176 = arith.addf %174, %175 : vector<8x32xf32>
    %cst_84 = arith.constant 6.000000e+00 : f32
    %177 = vector.broadcast %cst_84 : f32 to vector<8x32xf32>
    %178 = arith.divf %176, %177 : vector<8x32xf32>
    %cst_85 = arith.constant 0.000000e+00 : f32
    %cst_86 = arith.constant 1.000000e+00 : f32
    %179 = vector.broadcast %cst_85 : f32 to vector<8x32xf32>
    %180 = arith.maximumf %179, %178 : vector<8x32xf32>
    %181 = vector.broadcast %cst_86 : f32 to vector<8x32xf32>
    %182 = arith.minimumf %181, %180 : vector<8x32xf32>
    %183 = arith.mulf %168, %143 : vector<8x32xf32>
    %184 = arith.mulf %159, %173 : vector<8x32xf32>
    %185 = arith.addf %183, %184 : vector<8x32xf32>
    %cst_87 = arith.constant -1.000000e+00 : f32
    %cst_88 = arith.constant 1.000000e+00 : f32
    %186 = vector.broadcast %cst_87 : f32 to vector<8x32xf32>
    %187 = arith.maximumf %186, %185 : vector<8x32xf32>
    %188 = vector.broadcast %cst_88 : f32 to vector<8x32xf32>
    %189 = arith.minimumf %188, %187 : vector<8x32xf32>
    %190 = arith.mulf %182, %189 : vector<8x32xf32>
    %cst_89 = arith.constant dense<0.000000e+00> : vector<8x128xf32>
    %191 = tpu.matmul %190, %18, %cst_89 {dimension_numbers = #tpu.dot_dimension_numbers<[1], [0], [0], [1], [0, 0, 1, 1], [], []>} : vector<8x32xf32>, vector<32x128xf32>, vector<8x128xf32> -> vector<8x128xf32>
    %192 = arith.addf %22, %191 : vector<8x128xf32>
    %193 = vector.extract_strided_slice %192 {offsets = [0, 0], sizes = [8, 32], strides = [1, 1]} : vector<8x128xf32> to vector<8x32xf32>
    %cst_90 = arith.constant 3.000000e+00 : f32
    %194 = vector.broadcast %cst_90 : f32 to vector<8x32xf32>
    %195 = arith.addf %193, %194 : vector<8x32xf32>
    %cst_91 = arith.constant 6.000000e+00 : f32
    %196 = vector.broadcast %cst_91 : f32 to vector<8x32xf32>
    %197 = arith.divf %195, %196 : vector<8x32xf32>
    %cst_92 = arith.constant 0.000000e+00 : f32
    %cst_93 = arith.constant 1.000000e+00 : f32
    %198 = vector.broadcast %cst_92 : f32 to vector<8x32xf32>
    %199 = arith.maximumf %198, %197 : vector<8x32xf32>
    %200 = vector.broadcast %cst_93 : f32 to vector<8x32xf32>
    %201 = arith.minimumf %200, %199 : vector<8x32xf32>
    %202 = vector.extract_strided_slice %192 {offsets = [0, 32], sizes = [8, 32], strides = [1, 1]} : vector<8x128xf32> to vector<8x32xf32>
    %cst_94 = arith.constant 3.000000e+00 : f32
    %203 = vector.broadcast %cst_94 : f32 to vector<8x32xf32>
    %204 = arith.addf %202, %203 : vector<8x32xf32>
    %cst_95 = arith.constant 6.000000e+00 : f32
    %205 = vector.broadcast %cst_95 : f32 to vector<8x32xf32>
    %206 = arith.divf %204, %205 : vector<8x32xf32>
    %cst_96 = arith.constant 0.000000e+00 : f32
    %cst_97 = arith.constant 1.000000e+00 : f32
    %207 = vector.broadcast %cst_96 : f32 to vector<8x32xf32>
    %208 = arith.maximumf %207, %206 : vector<8x32xf32>
    %209 = vector.broadcast %cst_97 : f32 to vector<8x32xf32>
    %210 = arith.minimumf %209, %208 : vector<8x32xf32>
    %211 = vector.extract_strided_slice %192 {offsets = [0, 64], sizes = [8, 32], strides = [1, 1]} : vector<8x128xf32> to vector<8x32xf32>
    %cst_98 = arith.constant -1.000000e+00 : f32
    %cst_99 = arith.constant 1.000000e+00 : f32
    %212 = vector.broadcast %cst_98 : f32 to vector<8x32xf32>
    %213 = arith.maximumf %212, %211 : vector<8x32xf32>
    %214 = vector.broadcast %cst_99 : f32 to vector<8x32xf32>
    %215 = arith.minimumf %214, %213 : vector<8x32xf32>
    %216 = vector.extract_strided_slice %192 {offsets = [0, 96], sizes = [8, 32], strides = [1, 1]} : vector<8x128xf32> to vector<8x32xf32>
    %cst_100 = arith.constant 3.000000e+00 : f32
    %217 = vector.broadcast %cst_100 : f32 to vector<8x32xf32>
    %218 = arith.addf %216, %217 : vector<8x32xf32>
    %cst_101 = arith.constant 6.000000e+00 : f32
    %219 = vector.broadcast %cst_101 : f32 to vector<8x32xf32>
    %220 = arith.divf %218, %219 : vector<8x32xf32>
    %cst_102 = arith.constant 0.000000e+00 : f32
    %cst_103 = arith.constant 1.000000e+00 : f32
    %221 = vector.broadcast %cst_102 : f32 to vector<8x32xf32>
    %222 = arith.maximumf %221, %220 : vector<8x32xf32>
    %223 = vector.broadcast %cst_103 : f32 to vector<8x32xf32>
    %224 = arith.minimumf %223, %222 : vector<8x32xf32>
    %225 = arith.mulf %210, %185 : vector<8x32xf32>
    %226 = arith.mulf %201, %215 : vector<8x32xf32>
    %227 = arith.addf %225, %226 : vector<8x32xf32>
    %cst_104 = arith.constant -1.000000e+00 : f32
    %cst_105 = arith.constant 1.000000e+00 : f32
    %228 = vector.broadcast %cst_104 : f32 to vector<8x32xf32>
    %229 = arith.maximumf %228, %227 : vector<8x32xf32>
    %230 = vector.broadcast %cst_105 : f32 to vector<8x32xf32>
    %231 = arith.minimumf %230, %229 : vector<8x32xf32>
    %232 = arith.mulf %224, %231 : vector<8x32xf32>
    %cst_106 = arith.constant dense<0.000000e+00> : vector<8x128xf32>
    %233 = tpu.matmul %232, %18, %cst_106 {dimension_numbers = #tpu.dot_dimension_numbers<[1], [0], [0], [1], [0, 0, 1, 1], [], []>} : vector<8x32xf32>, vector<32x128xf32>, vector<8x128xf32> -> vector<8x128xf32>
    %234 = arith.addf %22, %233 : vector<8x128xf32>
    %235 = vector.extract_strided_slice %234 {offsets = [0, 0], sizes = [8, 32], strides = [1, 1]} : vector<8x128xf32> to vector<8x32xf32>
    %cst_107 = arith.constant 3.000000e+00 : f32
    %236 = vector.broadcast %cst_107 : f32 to vector<8x32xf32>
    %237 = arith.addf %235, %236 : vector<8x32xf32>
    %cst_108 = arith.constant 6.000000e+00 : f32
    %238 = vector.broadcast %cst_108 : f32 to vector<8x32xf32>
    %239 = arith.divf %237, %238 : vector<8x32xf32>
    %cst_109 = arith.constant 0.000000e+00 : f32
    %cst_110 = arith.constant 1.000000e+00 : f32
    %240 = vector.broadcast %cst_109 : f32 to vector<8x32xf32>
    %241 = arith.maximumf %240, %239 : vector<8x32xf32>
    %242 = vector.broadcast %cst_110 : f32 to vector<8x32xf32>
    %243 = arith.minimumf %242, %241 : vector<8x32xf32>
    %244 = vector.extract_strided_slice %234 {offsets = [0, 32], sizes = [8, 32], strides = [1, 1]} : vector<8x128xf32> to vector<8x32xf32>
    %cst_111 = arith.constant 3.000000e+00 : f32
    %245 = vector.broadcast %cst_111 : f32 to vector<8x32xf32>
    %246 = arith.addf %244, %245 : vector<8x32xf32>
    %cst_112 = arith.constant 6.000000e+00 : f32
    %247 = vector.broadcast %cst_112 : f32 to vector<8x32xf32>
    %248 = arith.divf %246, %247 : vector<8x32xf32>
    %cst_113 = arith.constant 0.000000e+00 : f32
    %cst_114 = arith.constant 1.000000e+00 : f32
    %249 = vector.broadcast %cst_113 : f32 to vector<8x32xf32>
    %250 = arith.maximumf %249, %248 : vector<8x32xf32>
    %251 = vector.broadcast %cst_114 : f32 to vector<8x32xf32>
    %252 = arith.minimumf %251, %250 : vector<8x32xf32>
    %253 = vector.extract_strided_slice %234 {offsets = [0, 64], sizes = [8, 32], strides = [1, 1]} : vector<8x128xf32> to vector<8x32xf32>
    %cst_115 = arith.constant -1.000000e+00 : f32
    %cst_116 = arith.constant 1.000000e+00 : f32
    %254 = vector.broadcast %cst_115 : f32 to vector<8x32xf32>
    %255 = arith.maximumf %254, %253 : vector<8x32xf32>
    %256 = vector.broadcast %cst_116 : f32 to vector<8x32xf32>
    %257 = arith.minimumf %256, %255 : vector<8x32xf32>
    %258 = vector.extract_strided_slice %234 {offsets = [0, 96], sizes = [8, 32], strides = [1, 1]} : vector<8x128xf32> to vector<8x32xf32>
    %cst_117 = arith.constant 3.000000e+00 : f32
    %259 = vector.broadcast %cst_117 : f32 to vector<8x32xf32>
    %260 = arith.addf %258, %259 : vector<8x32xf32>
    %cst_118 = arith.constant 6.000000e+00 : f32
    %261 = vector.broadcast %cst_118 : f32 to vector<8x32xf32>
    %262 = arith.divf %260, %261 : vector<8x32xf32>
    %cst_119 = arith.constant 0.000000e+00 : f32
    %cst_120 = arith.constant 1.000000e+00 : f32
    %263 = vector.broadcast %cst_119 : f32 to vector<8x32xf32>
    %264 = arith.maximumf %263, %262 : vector<8x32xf32>
    %265 = vector.broadcast %cst_120 : f32 to vector<8x32xf32>
    %266 = arith.minimumf %265, %264 : vector<8x32xf32>
    %267 = arith.mulf %252, %227 : vector<8x32xf32>
    %268 = arith.mulf %243, %257 : vector<8x32xf32>
    %269 = arith.addf %267, %268 : vector<8x32xf32>
    %cst_121 = arith.constant -1.000000e+00 : f32
    %cst_122 = arith.constant 1.000000e+00 : f32
    %270 = vector.broadcast %cst_121 : f32 to vector<8x32xf32>
    %271 = arith.maximumf %270, %269 : vector<8x32xf32>
    %272 = vector.broadcast %cst_122 : f32 to vector<8x32xf32>
    %273 = arith.minimumf %272, %271 : vector<8x32xf32>
    %274 = arith.mulf %266, %273 : vector<8x32xf32>
    %cst_123 = arith.constant dense<0.000000e+00> : vector<8x128xf32>
    %275 = tpu.matmul %274, %18, %cst_123 {dimension_numbers = #tpu.dot_dimension_numbers<[1], [0], [0], [1], [0, 0, 1, 1], [], []>} : vector<8x32xf32>, vector<32x128xf32>, vector<8x128xf32> -> vector<8x128xf32>
    %276 = arith.addf %22, %275 : vector<8x128xf32>
    %277 = vector.extract_strided_slice %276 {offsets = [0, 0], sizes = [8, 32], strides = [1, 1]} : vector<8x128xf32> to vector<8x32xf32>
    %cst_124 = arith.constant 3.000000e+00 : f32
    %278 = vector.broadcast %cst_124 : f32 to vector<8x32xf32>
    %279 = arith.addf %277, %278 : vector<8x32xf32>
    %cst_125 = arith.constant 6.000000e+00 : f32
    %280 = vector.broadcast %cst_125 : f32 to vector<8x32xf32>
    %281 = arith.divf %279, %280 : vector<8x32xf32>
    %cst_126 = arith.constant 0.000000e+00 : f32
    %cst_127 = arith.constant 1.000000e+00 : f32
    %282 = vector.broadcast %cst_126 : f32 to vector<8x32xf32>
    %283 = arith.maximumf %282, %281 : vector<8x32xf32>
    %284 = vector.broadcast %cst_127 : f32 to vector<8x32xf32>
    %285 = arith.minimumf %284, %283 : vector<8x32xf32>
    %286 = vector.extract_strided_slice %276 {offsets = [0, 32], sizes = [8, 32], strides = [1, 1]} : vector<8x128xf32> to vector<8x32xf32>
    %cst_128 = arith.constant 3.000000e+00 : f32
    %287 = vector.broadcast %cst_128 : f32 to vector<8x32xf32>
    %288 = arith.addf %286, %287 : vector<8x32xf32>
    %cst_129 = arith.constant 6.000000e+00 : f32
    %289 = vector.broadcast %cst_129 : f32 to vector<8x32xf32>
    %290 = arith.divf %288, %289 : vector<8x32xf32>
    %cst_130 = arith.constant 0.000000e+00 : f32
    %cst_131 = arith.constant 1.000000e+00 : f32
    %291 = vector.broadcast %cst_130 : f32 to vector<8x32xf32>
    %292 = arith.maximumf %291, %290 : vector<8x32xf32>
    %293 = vector.broadcast %cst_131 : f32 to vector<8x32xf32>
    %294 = arith.minimumf %293, %292 : vector<8x32xf32>
    %295 = vector.extract_strided_slice %276 {offsets = [0, 64], sizes = [8, 32], strides = [1, 1]} : vector<8x128xf32> to vector<8x32xf32>
    %cst_132 = arith.constant -1.000000e+00 : f32
    %cst_133 = arith.constant 1.000000e+00 : f32
    %296 = vector.broadcast %cst_132 : f32 to vector<8x32xf32>
    %297 = arith.maximumf %296, %295 : vector<8x32xf32>
    %298 = vector.broadcast %cst_133 : f32 to vector<8x32xf32>
    %299 = arith.minimumf %298, %297 : vector<8x32xf32>
    %300 = vector.extract_strided_slice %276 {offsets = [0, 96], sizes = [8, 32], strides = [1, 1]} : vector<8x128xf32> to vector<8x32xf32>
    %cst_134 = arith.constant 3.000000e+00 : f32
    %301 = vector.broadcast %cst_134 : f32 to vector<8x32xf32>
    %302 = arith.addf %300, %301 : vector<8x32xf32>
    %cst_135 = arith.constant 6.000000e+00 : f32
    %303 = vector.broadcast %cst_135 : f32 to vector<8x32xf32>
    %304 = arith.divf %302, %303 : vector<8x32xf32>
    %cst_136 = arith.constant 0.000000e+00 : f32
    %cst_137 = arith.constant 1.000000e+00 : f32
    %305 = vector.broadcast %cst_136 : f32 to vector<8x32xf32>
    %306 = arith.maximumf %305, %304 : vector<8x32xf32>
    %307 = vector.broadcast %cst_137 : f32 to vector<8x32xf32>
    %308 = arith.minimumf %307, %306 : vector<8x32xf32>
    %309 = arith.mulf %294, %269 : vector<8x32xf32>
    %310 = arith.mulf %285, %299 : vector<8x32xf32>
    %311 = arith.addf %309, %310 : vector<8x32xf32>
    %cst_138 = arith.constant -1.000000e+00 : f32
    %cst_139 = arith.constant 1.000000e+00 : f32
    %312 = vector.broadcast %cst_138 : f32 to vector<8x32xf32>
    %313 = arith.maximumf %312, %311 : vector<8x32xf32>
    %314 = vector.broadcast %cst_139 : f32 to vector<8x32xf32>
    %315 = arith.minimumf %314, %313 : vector<8x32xf32>
    %316 = arith.mulf %308, %315 : vector<8x32xf32>
    %cst_140 = arith.constant dense<0.000000e+00> : vector<8x128xf32>
    %317 = tpu.matmul %316, %18, %cst_140 {dimension_numbers = #tpu.dot_dimension_numbers<[1], [0], [0], [1], [0, 0, 1, 1], [], []>} : vector<8x32xf32>, vector<32x128xf32>, vector<8x128xf32> -> vector<8x128xf32>
    %318 = arith.addf %22, %317 : vector<8x128xf32>
    %319 = vector.extract_strided_slice %318 {offsets = [0, 0], sizes = [8, 32], strides = [1, 1]} : vector<8x128xf32> to vector<8x32xf32>
    %cst_141 = arith.constant 3.000000e+00 : f32
    %320 = vector.broadcast %cst_141 : f32 to vector<8x32xf32>
    %321 = arith.addf %319, %320 : vector<8x32xf32>
    %cst_142 = arith.constant 6.000000e+00 : f32
    %322 = vector.broadcast %cst_142 : f32 to vector<8x32xf32>
    %323 = arith.divf %321, %322 : vector<8x32xf32>
    %cst_143 = arith.constant 0.000000e+00 : f32
    %cst_144 = arith.constant 1.000000e+00 : f32
    %324 = vector.broadcast %cst_143 : f32 to vector<8x32xf32>
    %325 = arith.maximumf %324, %323 : vector<8x32xf32>
    %326 = vector.broadcast %cst_144 : f32 to vector<8x32xf32>
    %327 = arith.minimumf %326, %325 : vector<8x32xf32>
    %328 = vector.extract_strided_slice %318 {offsets = [0, 32], sizes = [8, 32], strides = [1, 1]} : vector<8x128xf32> to vector<8x32xf32>
    %cst_145 = arith.constant 3.000000e+00 : f32
    %329 = vector.broadcast %cst_145 : f32 to vector<8x32xf32>
    %330 = arith.addf %328, %329 : vector<8x32xf32>
    %cst_146 = arith.constant 6.000000e+00 : f32
    %331 = vector.broadcast %cst_146 : f32 to vector<8x32xf32>
    %332 = arith.divf %330, %331 : vector<8x32xf32>
    %cst_147 = arith.constant 0.000000e+00 : f32
    %cst_148 = arith.constant 1.000000e+00 : f32
    %333 = vector.broadcast %cst_147 : f32 to vector<8x32xf32>
    %334 = arith.maximumf %333, %332 : vector<8x32xf32>
    %335 = vector.broadcast %cst_148 : f32 to vector<8x32xf32>
    %336 = arith.minimumf %335, %334 : vector<8x32xf32>
    %337 = vector.extract_strided_slice %318 {offsets = [0, 64], sizes = [8, 32], strides = [1, 1]} : vector<8x128xf32> to vector<8x32xf32>
    %cst_149 = arith.constant -1.000000e+00 : f32
    %cst_150 = arith.constant 1.000000e+00 : f32
    %338 = vector.broadcast %cst_149 : f32 to vector<8x32xf32>
    %339 = arith.maximumf %338, %337 : vector<8x32xf32>
    %340 = vector.broadcast %cst_150 : f32 to vector<8x32xf32>
    %341 = arith.minimumf %340, %339 : vector<8x32xf32>
    %342 = vector.extract_strided_slice %318 {offsets = [0, 96], sizes = [8, 32], strides = [1, 1]} : vector<8x128xf32> to vector<8x32xf32>
    %cst_151 = arith.constant 3.000000e+00 : f32
    %343 = vector.broadcast %cst_151 : f32 to vector<8x32xf32>
    %344 = arith.addf %342, %343 : vector<8x32xf32>
    %cst_152 = arith.constant 6.000000e+00 : f32
    %345 = vector.broadcast %cst_152 : f32 to vector<8x32xf32>
    %346 = arith.divf %344, %345 : vector<8x32xf32>
    %cst_153 = arith.constant 0.000000e+00 : f32
    %cst_154 = arith.constant 1.000000e+00 : f32
    %347 = vector.broadcast %cst_153 : f32 to vector<8x32xf32>
    %348 = arith.maximumf %347, %346 : vector<8x32xf32>
    %349 = vector.broadcast %cst_154 : f32 to vector<8x32xf32>
    %350 = arith.minimumf %349, %348 : vector<8x32xf32>
    %351 = arith.mulf %336, %311 : vector<8x32xf32>
    %352 = arith.mulf %327, %341 : vector<8x32xf32>
    %353 = arith.addf %351, %352 : vector<8x32xf32>
    %cst_155 = arith.constant -1.000000e+00 : f32
    %cst_156 = arith.constant 1.000000e+00 : f32
    %354 = vector.broadcast %cst_155 : f32 to vector<8x32xf32>
    %355 = arith.maximumf %354, %353 : vector<8x32xf32>
    %356 = vector.broadcast %cst_156 : f32 to vector<8x32xf32>
    %357 = arith.minimumf %356, %355 : vector<8x32xf32>
    %358 = arith.mulf %350, %357 : vector<8x32xf32>
    %359 = tpu.concatenate %64, %106, %148, %190, %232, %274, %316, %358 in 0 : vector<8x32xf32>, vector<8x32xf32>, vector<8x32xf32>, vector<8x32xf32>, vector<8x32xf32>, vector<8x32xf32>, vector<8x32xf32>, vector<8x32xf32> -> vector<64x32xf32>
    %c0_157 = arith.constant 0 : index
    %c0_158 = arith.constant 0 : index
    %360 = vector.load %arg9[%c0_157, %c0_158] : memref<32x128xf32, #tpu.memory_space<vmem>>, vector<32x128xf32>
    %cst_159 = arith.constant dense<0.000000e+00> : vector<64x128xf32>
    %361 = tpu.matmul %359, %360, %cst_159 {dimension_numbers = #tpu.dot_dimension_numbers<[1], [0], [0], [1], [0, 0, 1, 1], [], []>} : vector<64x32xf32>, vector<32x128xf32>, vector<64x128xf32> -> vector<64x128xf32>
    %c0_160 = arith.constant 0 : index
    %c0_161 = arith.constant 0 : index
    %362 = vector.load %arg10[%c0_160, %c0_161] : memref<1x128xf32, #tpu.memory_space<vmem>>, vector<1x128xf32>
    %363 = vector.broadcast %362 : vector<1x128xf32> to vector<64x128xf32>
    %364 = arith.addf %361, %363 : vector<64x128xf32>
    %365 = vector.shape_cast %364 : vector<64x128xf32> to vector<8x8x128xf32>
    %c0_162 = arith.constant 0 : index
    %c0_163 = arith.constant 0 : index
    %c0_164 = arith.constant 0 : index
    %366 = vector.load %arg11[%c0_162, %c0_163, %c0_164] : memref<8x8x128xf32, #tpu.memory_space<vmem>>, vector<8x8x128xf32>
    tpu.vector_store %arg11[%c0_162, %c0_163, %c0_164], %365 {strides = array<i32>} : memref<8x8x128xf32, #tpu.memory_space<vmem>>, vector<8x8x128xf32>,
    return
  }
}

</mosaic_0001>

<llo_original>
// kernel: tpu_custom_call.1
$region0: #{tpu_custom_call.1}
  #allocation0 [shape = 'u32[]', space=smem, size = 0x4, offset = 0x4, fixed_abs, tag = 'smem constant byte address 0x4 - core index']
  #allocation1 [shape = 'u32[72,128]{1,0:T(1,128)}', space=vmem, size = 0x9000, scoped, tag = 'internal scratch']
  %s0 = inlined_call_operand.hbm [shape: f32[8,128], index: 0, kind: input, shape index: {}]
  %s1 = inlined_call_operand.hbm [shape: f32[8,32], index: 1, kind: input, shape index: {}]
  %s2 = inlined_call_operand.hbm [shape: f32[32,32], index: 2, kind: input, shape index: {}]
  %s3 = inlined_call_operand.vmem [shape: f32[1,32], index: 3, kind: input, shape index: {}]
  %s4 = inlined_call_operand.hbm [shape: f32[32,32], index: 4, kind: input, shape index: {}]
  %s5 = inlined_call_operand.vmem [shape: f32[1,32], index: 5, kind: input, shape index: {}]
  %s6 = inlined_call_operand.hbm [shape: f32[32,128], index: 6, kind: input, shape index: {}]
  %s7 = inlined_call_operand.hbm [shape: f32[32,128], index: 7, kind: input, shape index: {}]
  %s8 = inlined_call_operand.vmem [shape: f32[1,128], index: 8, kind: input, shape index: {}]
  %s9 = inlined_call_operand.hbm [shape: f32[32,128], index: 9, kind: input, shape index: {}]
  %s10 = inlined_call_operand.vmem [shape: f32[1,128], index: 10, kind: input, shape index: {}]
  %s11 = inlined_call_operand.hbm [shape: f32[8,8,128], index: 11, kind: output, shape index: {}]
  %s12 = sld [smem:[#allocation0]]
  $region82: #{tpu_custom_call.1} parent=0
    _
  %s14 = ssub.s32 1, %s12
  %s15 = scalar_select 0, %s14, %s12
  $region1: #{tpu_custom_call.1} parent=0
    #allocation2 [shape = 'u8[4096]{0}', space=vmem, size = 0x1000, scoped, tag = 'input window, operand 0, single buffered']
    #allocation3 [shape = 's32[1]{0}', space=sflag, size = 0x4, scoped, tag = 'scoped memory for tpu_custom_call.1']
    #allocation4 [shape = 's32[1]{0}', space=sflag, size = 0x4, scoped, tag = 'scoped memory for tpu_custom_call.1']
    #allocation5 [shape = 'u8[4096]{0}', space=vmem, size = 0x1000, scoped, tag = 'input window, operand 1, single buffered']
    #allocation6 [shape = 's32[1]{0}', space=sflag, size = 0x4, scoped, tag = 'scoped memory for tpu_custom_call.1']
    #allocation7 [shape = 'u8[16384]{0}', space=vmem, size = 0x4000, scoped, tag = 'input window, operand 2, single buffered']
    #allocation8 [shape = 'u8[16384]{0}', space=vmem, size = 0x4000, scoped, tag = 'input window, operand 4, single buffered']
    #allocation9 [shape = 's32[1]{0}', space=sflag, size = 0x4, scoped, tag = 'scoped memory for tpu_custom_call.1']
    #allocation10 [shape = 'u8[16384]{0}', space=vmem, size = 0x4000, scoped, tag = 'input window, operand 6, single buffered']
    #allocation11 [shape = 'u8[16384]{0}', space=vmem, size = 0x4000, scoped, tag = 'input window, operand 7, single buffered']
    #allocation12 [shape = 's32[1]{0}', space=sflag, size = 0x4, scoped, tag = 'scoped memory for tpu_custom_call.1']
    #allocation13 [shape = 'u8[16384]{0}', space=vmem, size = 0x4000, scoped, tag = 'input window, operand 9, single buffered']
    #allocation14 [shape = 'u8[32768]{0}', space=vmem, size = 0x8000, scoped, tag = 'output window, operand 0, single buffered']
    %16 = vsyncpa [#allocation3], 0
    %17 = vsyncpa [#allocation6], 0
    %18 = vsyncpa [#allocation9], 0
    %19 = vsyncpa [#allocation12], 0
    %20 = vsyncpa [#allocation4], 0
    // Predicated region
    $region2: #{tpu_custom_call.1} parent=1 // pred_check
      _
    $region3: #{tpu_custom_call.1} parent=1 // pred_check_branch
      %22 = sbr.rel (0) target = $region5
    $region4: #{tpu_custom_call.1} parent=1 // pred_region
      %24 = vsyncadd [#allocation3], 0
      %s26 = sshll.u32 %s0, 4
      %s27 = int_to_ptr.hbm [resolvable:$true] %s26
      %s28 = sshll.u32 [#allocation2], 4
      %s29 = int_to_ptr.vmem [resolvable:$true] %s28
      %31 = dma.hbm_to_vmem [thread:$0]  %s27, 128, %s29, [#allocation3]
    $region5: #{tpu_custom_call.1} parent=1 // pred_fallthru
      _
    // Predicated region
    $region6: #{tpu_custom_call.1} parent=1 // pred_check
      _
    $region7: #{tpu_custom_call.1} parent=1 // pred_check_branch
      %33 = sbr.rel (0) target = $region9
    $region8: #{tpu_custom_call.1} parent=1 // pred_region
      %35 = vsyncadd [#allocation6], 0
      %s37 = sshll.u32 %s1, 4
      %s38 = int_to_ptr.hbm [resolvable:$true] %s37
      %s39 = sshll.u32 [#allocation5], 4
      %s40 = int_to_ptr.vmem [resolvable:$true] %s39
      %42 = dma.hbm_to_vmem [thread:$0]  %s38, 128, %s40, [#allocation6]
    $region9: #{tpu_custom_call.1} parent=1 // pred_fallthru
      _
    // Predicated region
    $region10: #{tpu_custom_call.1} parent=1 // pred_check
      _
    $region11: #{tpu_custom_call.1} parent=1 // pred_check_branch
      %44 = sbr.rel (0) target = $region13
    $region12: #{tpu_custom_call.1} parent=1 // pred_region
      %46 = vsyncadd [#allocation6], 0
      %s47 = sshll.u32 %s2, 4
      %s48 = int_to_ptr.hbm [resolvable:$true] %s47
      %s49 = sshll.u32 [#allocation7], 4
      %s50 = int_to_ptr.vmem [resolvable:$true] %s49
      %55 = dma.hbm_to_vmem [thread:$0]  %s48, 512, %s50, [#allocation6], 128, 128, 8
    $region13: #{tpu_custom_call.1} parent=1 // pred_fallthru
      _
    // Predicated region
    $region14: #{tpu_custom_call.1} parent=1 // pred_check
      _
    $region15: #{tpu_custom_call.1} parent=1 // pred_check_branch
      %57 = sbr.rel (0) target = $region17
    $region16: #{tpu_custom_call.1} parent=1 // pred_region
      _
    $region17: #{tpu_custom_call.1} parent=1 // pred_fallthru
      _
    // Predicated region
    $region18: #{tpu_custom_call.1} parent=1 // pred_check
      _
    $region19: #{tpu_custom_call.1} parent=1 // pred_check_branch
      %59 = sbr.rel (0) target = $region21
    $region20: #{tpu_custom_call.1} parent=1 // pred_region
      %61 = vsyncadd [#allocation9], 0
      %s62 = sshll.u32 %s4, 4
      %s63 = int_to_ptr.hbm [resolvable:$true] %s62
      %s64 = sshll.u32 [#allocation8], 4
      %s65 = int_to_ptr.vmem [resolvable:$true] %s64
      %70 = dma.hbm_to_vmem [thread:$0]  %s63, 512, %s65, [#allocation9], 128, 128, 8
    $region21: #{tpu_custom_call.1} parent=1 // pred_fallthru
      _
    // Predicated region
    $region22: #{tpu_custom_call.1} parent=1 // pred_check
      _
    $region23: #{tpu_custom_call.1} parent=1 // pred_check_branch
      %72 = sbr.rel (0) target = $region25
    $region24: #{tpu_custom_call.1} parent=1 // pred_region
      _
    $region25: #{tpu_custom_call.1} parent=1 // pred_fallthru
      _
    // Predicated region
    $region26: #{tpu_custom_call.1} parent=1 // pred_check
      _
    $region27: #{tpu_custom_call.1} parent=1 // pred_check_branch
      %74 = sbr.rel (0) target = $region29
    $region28: #{tpu_custom_call.1} parent=1 // pred_region
      %76 = vsyncadd [#allocation9], 0
      %s77 = sshll.u32 %s6, 4
      %s78 = int_to_ptr.hbm [resolvable:$true] %s77
      %s79 = sshll.u32 [#allocation10], 4
      %s80 = int_to_ptr.vmem [resolvable:$true] %s79
      %85 = dma.hbm_to_vmem [thread:$0]  %s78, 512, %s80, [#allocation9], 128, 128, 8
    $region29: #{tpu_custom_call.1} parent=1 // pred_fallthru
      _
    // Predicated region
    $region30: #{tpu_custom_call.1} parent=1 // pred_check
      _
    $region31: #{tpu_custom_call.1} parent=1 // pred_check_branch
      %87 = sbr.rel (0) target = $region33
    $region32: #{tpu_custom_call.1} parent=1 // pred_region
      %89 = vsyncadd [#allocation12], 0
      %s90 = sshll.u32 %s7, 4
      %s91 = int_to_ptr.hbm [resolvable:$true] %s90
      %s92 = sshll.u32 [#allocation11], 4
      %s93 = int_to_ptr.vmem [resolvable:$true] %s92
      %98 = dma.hbm_to_vmem [thread:$0]  %s91, 512, %s93, [#allocation12], 128, 128, 8
    $region33: #{tpu_custom_call.1} parent=1 // pred_fallthru
      _
    // Predicated region
    $region34: #{tpu_custom_call.1} parent=1 // pred_check
      _
    $region35: #{tpu_custom_call.1} parent=1 // pred_check_branch
      %100 = sbr.rel (0) target = $region37
    $region36: #{tpu_custom_call.1} parent=1 // pred_region
      _
    $region37: #{tpu_custom_call.1} parent=1 // pred_fallthru
      _
    // Predicated region
    $region38: #{tpu_custom_call.1} parent=1 // pred_check
      _
    $region39: #{tpu_custom_call.1} parent=1 // pred_check_branch
      %102 = sbr.rel (0) target = $region41
    $region40: #{tpu_custom_call.1} parent=1 // pred_region
      %104 = vsyncadd [#allocation12], 0
      %s105 = sshll.u32 %s9, 4
      %s106 = int_to_ptr.hbm [resolvable:$true] %s105
      %s107 = sshll.u32 [#allocation13], 4
      %s108 = int_to_ptr.vmem [resolvable:$true] %s107
      %113 = dma.hbm_to_vmem [thread:$0]  %s106, 512, %s108, [#allocation12], 128, 128, 8
    $region41: #{tpu_custom_call.1} parent=1 // pred_fallthru
      _
    // Predicated region
    $region42: #{tpu_custom_call.1} parent=1 // pred_check
      _
    $region43: #{tpu_custom_call.1} parent=1 // pred_check_branch
      %115 = sbr.rel (0) target = $region45
    $region44: #{tpu_custom_call.1} parent=1 // pred_region
      _
    $region45: #{tpu_custom_call.1} parent=1 // pred_fallthru
      _
    // Predicated region
    $region46: #{tpu_custom_call.1} parent=1 // pred_check
      _
    $region47: #{tpu_custom_call.1} parent=1 // pred_check_branch
      %117 = sbr.rel (0) target = $region49
    $region48: #{tpu_custom_call.1} parent=1 // pred_region
      %119 = dma.done [#allocation3], 128
    $region49: #{tpu_custom_call.1} parent=1 // pred_fallthru
      _
    // Predicated region
    $region50: #{tpu_custom_call.1} parent=1 // pred_check
      _
    $region51: #{tpu_custom_call.1} parent=1 // pred_check_branch
      %121 = sbr.rel (0) target = $region53
    $region52: #{tpu_custom_call.1} parent=1 // pred_region
      %123 = dma.done [#allocation6], 128
    $region53: #{tpu_custom_call.1} parent=1 // pred_fallthru
      _
    // Predicated region
    $region54: #{tpu_custom_call.1} parent=1 // pred_check
      _
    $region55: #{tpu_custom_call.1} parent=1 // pred_check_branch
      %125 = sbr.rel (0) target = $region57
    $region56: #{tpu_custom_call.1} parent=1 // pred_region
      %127 = dma.done [#allocation6], 512
    $region57: #{tpu_custom_call.1} parent=1 // pred_fallthru
      _
    // Predicated region
    $region58: #{tpu_custom_call.1} parent=1 // pred_check
      _
    $region59: #{tpu_custom_call.1} parent=1 // pred_check_branch
      %129 = sbr.rel (0) target = $region61
    $region60: #{tpu_custom_call.1} parent=1 // pred_region
      %131 = dma.done [#allocation9], 512
    $region61: #{tpu_custom_call.1} parent=1 // pred_fallthru
      _
    // Predicated region
    $region62: #{tpu_custom_call.1} parent=1 // pred_check
      _
    $region63: #{tpu_custom_call.1} parent=1 // pred_check_branch
      %133 = sbr.rel (0) target = $region65
    $region64: #{tpu_custom_call.1} parent=1 // pred_region
      %135 = dma.done [#allocation9], 512
    $region65: #{tpu_custom_call.1} parent=1 // pred_fallthru
      _
    // Predicated region
    $region66: #{tpu_custom_call.1} parent=1 // pred_check
      _
    $region67: #{tpu_custom_call.1} parent=1 // pred_check_branch
      %137 = sbr.rel (0) target = $region69
    $region68: #{tpu_custom_call.1} parent=1 // pred_region
      %139 = dma.done [#allocation12], 512
    $region69: #{tpu_custom_call.1} parent=1 // pred_fallthru
      _
    // Predicated region
    $region70: #{tpu_custom_call.1} parent=1 // pred_check
      _
    $region71: #{tpu_custom_call.1} parent=1 // pred_check_branch
      %141 = sbr.rel (0) target = $region73
    $region72: #{tpu_custom_call.1} parent=1 // pred_region
      %143 = dma.done [#allocation12], 512
    $region73: #{tpu_custom_call.1} parent=1 // pred_fallthru
      _
    %v144 = vld [vmem:[#allocation5] sm:$0xff]
    %v145 = vld [vmem:[#allocation7] sm:$0xff]
    %v146 = vld [vmem:[#allocation7 + $0x8] sm:$0xff]
    %v147 = vld [vmem:[#allocation7 + $0x10] sm:$0xff]
    %v148 = vld [vmem:[#allocation7 + $0x18] sm:$0xff]
    %v149 = vld [vmem:[%s3] sm:$0x1]
    %v151 = vperm.slane %v149, 0
    %vm153 = vcmask 261120
    %v155 = vsel %vm153, %v144, 0
    %157 = vmatpush.msra.mxu0 0.0
    %158 = vmatpush.msra.mxu0 0.0
    %159 = vmatpush.msra.mxu0 0.0
    %160 = vmatpush.msra.mxu0 0.0
    %161 = vmatpush.msra.mxu0 0.0
    %162 = vmatpush.msra.mxu0 0.0
    %163 = vmatpush.msra.mxu0 0.0
    %164 = vmatpush.msra.mxu0 0.0
    %165 = vmatpush.msra.mxu0 0.0
    %166 = vmatpush.msra.mxu0 0.0
    %167 = vmatpush.msra.mxu0 0.0
    %168 = vmatpush.msra.mxu0 0.0
    %169 = vmatpush.msra.mxu0 %v148
    %170 = vmatpush.msra.mxu0 %v147
    %171 = vmatpush.msra.mxu0 %v146
    %172 = vmatpush.msra.mxu0 %v145
    %173 = vmatmul.f32.gmra.mxu0 %v155
    %v174 = vpop.f32.mrf.mxu0
    %v175 = vadd.f32 %v151, %v174
    %176 = vdwg.mxu0
    %vm177 = vcmp.gt.f32.partialorder %v175, 0.0
    %v178 = vmul.f32 %v175, 0.01
    %v179 = vsel %vm177, %v175, %v178
    %v180 = vld [vmem:[#allocation8] sm:$0xff]
    %v181 = vld [vmem:[#allocation8 + $0x8] sm:$0xff]
    %v182 = vld [vmem:[#allocation8 + $0x10] sm:$0xff]
    %v183 = vld [vmem:[#allocation8 + $0x18] sm:$0xff]
    %v184 = vld [vmem:[%s5] sm:$0x1]
    %v186 = vperm.slane %v184, 0
    %v189 = vsel %vm153, %v179, 0
    %191 = vmatpush.msra.mxu0 0.0
    %192 = vmatpush.msra.mxu0 0.0
    %193 = vmatpush.msra.mxu0 0.0
    %194 = vmatpush.msra.mxu0 0.0
    %195 = vmatpush.msra.mxu0 0.0
    %196 = vmatpush.msra.mxu0 0.0
    %197 = vmatpush.msra.mxu0 0.0
    %198 = vmatpush.msra.mxu0 0.0
    %199 = vmatpush.msra.mxu0 0.0
    %200 = vmatpush.msra.mxu0 0.0
    %201 = vmatpush.msra.mxu0 0.0
    %202 = vmatpush.msra.mxu0 0.0
    %203 = vmatpush.msra.mxu0 %v183
    %204 = vmatpush.msra.mxu0 %v182
    %205 = vmatpush.msra.mxu0 %v181
    %206 = vmatpush.msra.mxu0 %v180
    %207 = vmatmul.f32.gmra.mxu0 %v189
    %v208 = vpop.f32.mrf.mxu0
    %v209 = vadd.f32 %v186, %v208
    %210 = vdwg.mxu0
    %v211 = vld [vmem:[#allocation10] sm:$0xff]
    %v212 = vld [vmem:[#allocation10 + $0x8] sm:$0xff]
    %v213 = vld [vmem:[#allocation10 + $0x10] sm:$0xff]
    %v214 = vld [vmem:[#allocation10 + $0x18] sm:$0xff]
    %v215 = vld [vmem:[#allocation11] sm:$0xff]
    %v216 = vld [vmem:[#allocation11 + $0x8] sm:$0xff]
    %v217 = vld [vmem:[#allocation11 + $0x10] sm:$0xff]
    %v218 = vld [vmem:[#allocation11 + $0x18] sm:$0xff]
    %v219 = vld [vmem:[#allocation2] sm:$0xff]
    %v220 = vld [vmem:[%s8] sm:$0x1]
    %v222 = vperm.slane %v220, 0
    %v225 = vsel %vm153, %v209, 0
    %227 = vmatpush.msra.mxu0 0.0
    %228 = vmatpush.msra.mxu0 0.0
    %229 = vmatpush.msra.mxu0 0.0
    %230 = vmatpush.msra.mxu0 0.0
    %231 = vmatpush.msra.mxu0 0.0
    %232 = vmatpush.msra.mxu0 0.0
    %233 = vmatpush.msra.mxu0 0.0
    %234 = vmatpush.msra.mxu0 0.0
    %235 = vmatpush.msra.mxu0 0.0
    %236 = vmatpush.msra.mxu0 0.0
    %237 = vmatpush.msra.mxu0 0.0
    %238 = vmatpush.msra.mxu0 0.0
    %239 = vmatpush.msra.mxu0 %v214
    %240 = vmatpush.msra.mxu0 %v213
    %241 = vmatpush.msra.mxu0 %v212
    %242 = vmatpush.msra.mxu0 %v211
    %243 = vmatmul.f32.gmra.mxu0 %v225
    %v244 = vpop.f32.mrf.mxu0
    %v245 = vadd.f32 0.0, %v244
    %246 = vdwg.mxu0
    %v247 = vadd.f32 %v219, %v245
    %v248 = vadd.f32 %v247, 3.0
    %v249 = vrcp.pop 6.0
    %v250 = vmul.f32 6.0, %v249
    %v251 = vsub.f32 1.0, %v250
    %v252 = vmul.f32 %v249, %v251
    %v253 = vadd.f32 %v249, %v252
    %vm254 = vweird.f32 %v249
    %v255 = vsel %vm254, %v249, %v253
    %v256 = vmul.f32 %v248, %v255
    %v257 = vmax.f32 %v256, 0.0
    %v258 = vmin.f32 %v257, 1.0
    %v259 = vmax.f32 %v247, -1.0
    %v260 = vmin.f32 %v259, 1.0
    %v261 = vmul.f32 %v258, 0.0
    %263 = vrot.lane.b32.xlu0 %v260, 64
    %v264 = vpop.permute.xlu0 %263
    %v266 = vmul.f32 %v258, %v264
    %268 = vrot.lane.b32.xlu0 %v266, 32
    %v269 = vpop.permute.xlu0 %268
    %v271 = vadd.f32 %v261, %v269
    %v272 = vmax.f32 %v271, -1.0
    %v273 = vmin.f32 %v272, 1.0
    %275 = vrot.lane.b32.xlu0 %v273, 64
    %v276 = vpop.permute.xlu0 %275
    %v278 = vmul.f32 %v258, %v276
    %280 = vrot.lane.b32.xlu0 %v278, 32
    %v281 = vpop.permute.xlu0 %280
    %v282 = vsel %vm153, %v281, 0
    %284 = vmatpush.msra.mxu0 0.0
    %285 = vmatpush.msra.mxu0 0.0
    %286 = vmatpush.msra.mxu0 0.0
    %287 = vmatpush.msra.mxu0 0.0
    %288 = vmatpush.msra.mxu0 0.0
    %289 = vmatpush.msra.mxu0 0.0
    %290 = vmatpush.msra.mxu0 0.0
    %291 = vmatpush.msra.mxu0 0.0
    %292 = vmatpush.msra.mxu0 0.0
    %293 = vmatpush.msra.mxu0 0.0
    %294 = vmatpush.msra.mxu0 0.0
    %295 = vmatpush.msra.mxu0 0.0
    %296 = vmatpush.msra.mxu0 %v218
    %297 = vmatpush.msra.mxu0 %v217
    %298 = vmatpush.msra.mxu0 %v216
    %299 = vmatpush.msra.mxu0 %v215
    %300 = vmatmul.f32.gmra.mxu0 %v282
    %v301 = vpop.f32.mrf.mxu0
    %v302 = vadd.f32 0.0, %v301
    %303 = vdwg.mxu0
    %v304 = vadd.f32 %v222, %v302
    %v305 = vadd.f32 %v304, 3.0
    %v306 = vmul.f32 %v305, %v255
    %v307 = vmax.f32 %v306, 0.0
    %v308 = vmin.f32 %v307, 1.0
    %v309 = vmax.f32 %v304, -1.0
    %v310 = vmin.f32 %v309, 1.0
    %v311 = vmul.f32 %v308, %v271
    %313 = vrot.lane.b32.xlu0 %v310, 64
    %v314 = vpop.permute.xlu0 %313
    %v316 = vmul.f32 %v308, %v314
    %318 = vrot.lane.b32.xlu0 %v316, 32
    %v319 = vpop.permute.xlu0 %318
    %v321 = vadd.f32 %v311, %v319
    %v322 = vmax.f32 %v321, -1.0
    %v323 = vmin.f32 %v322, 1.0
    %325 = vrot.lane.b32.xlu0 %v323, 64
    %v326 = vpop.permute.xlu0 %325
    %v328 = vmul.f32 %v308, %v326
    %330 = vrot.lane.b32.xlu0 %v328, 32
    %v331 = vpop.permute.xlu0 %330
    %v332 = vsel %vm153, %v331, 0
    %334 = vmatpush.msra.mxu0 0.0
    %335 = vmatpush.msra.mxu0 0.0
    %336 = vmatpush.msra.mxu0 0.0
    %337 = vmatpush.msra.mxu0 0.0
    %338 = vmatpush.msra.mxu0 0.0
    %339 = vmatpush.msra.mxu0 0.0
    %340 = vmatpush.msra.mxu0 0.0
    %341 = vmatpush.msra.mxu0 0.0
    %342 = vmatpush.msra.mxu0 0.0
    %343 = vmatpush.msra.mxu0 0.0
    %344 = vmatpush.msra.mxu0 0.0
    %345 = vmatpush.msra.mxu0 0.0
    %346 = vmatpush.msra.mxu0 %v218
    %347 = vmatpush.msra.mxu0 %v217
    %348 = vmatpush.msra.mxu0 %v216
    %349 = vmatpush.msra.mxu0 %v215
    %350 = vmatmul.f32.gmra.mxu0 %v332
    %v351 = vpop.f32.mrf.mxu0
    %v352 = vadd.f32 0.0, %v351
    %353 = vdwg.mxu0
    %v354 = vadd.f32 %v222, %v352
    %v355 = vadd.f32 %v354, 3.0
    %v356 = vmul.f32 %v355, %v255
    %v357 = vmax.f32 %v356, 0.0
    %v358 = vmin.f32 %v357, 1.0
    %v359 = vmax.f32 %v354, -1.0
    %v360 = vmin.f32 %v359, 1.0
    %v361 = vmul.f32 %v358, %v321
    %363 = vrot.lane.b32.xlu0 %v360, 64
    %v364 = vpop.permute.xlu0 %363
    %v366 = vmul.f32 %v358, %v364
    %368 = vrot.lane.b32.xlu0 %v366, 32
    %v369 = vpop.permute.xlu0 %368
    %v371 = vadd.f32 %v361, %v369
    %v372 = vmax.f32 %v371, -1.0
    %v373 = vmin.f32 %v372, 1.0
    %375 = vrot.lane.b32.xlu0 %v373, 64
    %v376 = vpop.permute.xlu0 %375
    %v378 = vmul.f32 %v358, %v376
    %380 = vrot.lane.b32.xlu0 %v378, 32
    %v381 = vpop.permute.xlu0 %380
    %v382 = vsel %vm153, %v381, 0
    %384 = vmatpush.msra.mxu0 0.0
    %385 = vmatpush.msra.mxu0 0.0
    %386 = vmatpush.msra.mxu0 0.0
    %387 = vmatpush.msra.mxu0 0.0
    %388 = vmatpush.msra.mxu0 0.0
    %389 = vmatpush.msra.mxu0 0.0
    %390 = vmatpush.msra.mxu0 0.0
    %391 = vmatpush.msra.mxu0 0.0
    %392 = vmatpush.msra.mxu0 0.0
    %393 = vmatpush.msra.mxu0 0.0
    %394 = vmatpush.msra.mxu0 0.0
    %395 = vmatpush.msra.mxu0 0.0
    %396 = vmatpush.msra.mxu0 %v218
    %397 = vmatpush.msra.mxu0 %v217
    %398 = vmatpush.msra.mxu0 %v216
    %399 = vmatpush.msra.mxu0 %v215
    %400 = vmatmul.f32.gmra.mxu0 %v382
    %v401 = vpop.f32.mrf.mxu0
    %v402 = vadd.f32 0.0, %v401
    %403 = vdwg.mxu0
    %v404 = vadd.f32 %v222, %v402
    %v405 = vadd.f32 %v404, 3.0
    %v406 = vmul.f32 %v405, %v255
    %v407 = vmax.f32 %v406, 0.0
    %v408 = vmin.f32 %v407, 1.0
    %v409 = vmax.f32 %v404, -1.0
    %v410 = vmin.f32 %v409, 1.0
    %v411 = vmul.f32 %v408, %v371
    %413 = vrot.lane.b32.xlu0 %v410, 64
    %v414 = vpop.permute.xlu0 %413
    %v416 = vmul.f32 %v408, %v414
    %418 = vrot.lane.b32.xlu0 %v416, 32
    %v419 = vpop.permute.xlu0 %418
    %v421 = vadd.f32 %v411, %v419
    %v422 = vmax.f32 %v421, -1.0
    %v423 = vmin.f32 %v422, 1.0
    %425 = vrot.lane.b32.xlu0 %v423, 64
    %v426 = vpop.permute.xlu0 %425
    %v428 = vmul.f32 %v408, %v426
    %430 = vrot.lane.b32.xlu0 %v428, 32
    %v431 = vpop.permute.xlu0 %430
    %v432 = vsel %vm153, %v431, 0
    %434 = vmatpush.msra.mxu0 0.0
    %435 = vmatpush.msra.mxu0 0.0
    %436 = vmatpush.msra.mxu0 0.0
    %437 = vmatpush.msra.mxu0 0.0
    %438 = vmatpush.msra.mxu0 0.0
    %439 = vmatpush.msra.mxu0 0.0
    %440 = vmatpush.msra.mxu0 0.0
    %441 = vmatpush.msra.mxu0 0.0
    %442 = vmatpush.msra.mxu0 0.0
    %443 = vmatpush.msra.mxu0 0.0
    %444 = vmatpush.msra.mxu0 0.0
    %445 = vmatpush.msra.mxu0 0.0
    %446 = vmatpush.msra.mxu0 %v218
    %447 = vmatpush.msra.mxu0 %v217
    %448 = vmatpush.msra.mxu0 %v216
    %449 = vmatpush.msra.mxu0 %v215
    %450 = vmatmul.f32.gmra.mxu0 %v432
    %v451 = vpop.f32.mrf.mxu0
    %v452 = vadd.f32 0.0, %v451
    %453 = vdwg.mxu0
    %v454 = vadd.f32 %v222, %v452
    %v455 = vadd.f32 %v454, 3.0
    %v456 = vmul.f32 %v455, %v255
    %v457 = vmax.f32 %v456, 0.0
    %v458 = vmin.f32 %v457, 1.0
    %v459 = vmax.f32 %v454, -1.0
    %v460 = vmin.f32 %v459, 1.0
    %v461 = vmul.f32 %v458, %v421
    %463 = vrot.lane.b32.xlu0 %v460, 64
    %v464 = vpop.permute.xlu0 %463
    %v466 = vmul.f32 %v458, %v464
    %468 = vrot.lane.b32.xlu0 %v466, 32
    %v469 = vpop.permute.xlu0 %468
    %v471 = vadd.f32 %v461, %v469
    %v472 = vmax.f32 %v471, -1.0
    %v473 = vmin.f32 %v472, 1.0
    %475 = vrot.lane.b32.xlu0 %v473, 64
    %v476 = vpop.permute.xlu0 %475
    %v478 = vmul.f32 %v458, %v476
    %480 = vrot.lane.b32.xlu0 %v478, 32
    %v481 = vpop.permute.xlu0 %480
    %v482 = vsel %vm153, %v481, 0
    %484 = vmatpush.msra.mxu0 0.0
    %485 = vmatpush.msra.mxu0 0.0
    %486 = vmatpush.msra.mxu0 0.0
    %487 = vmatpush.msra.mxu0 0.0
    %488 = vmatpush.msra.mxu0 0.0
    %489 = vmatpush.msra.mxu0 0.0
    %490 = vmatpush.msra.mxu0 0.0
    %491 = vmatpush.msra.mxu0 0.0
    %492 = vmatpush.msra.mxu0 0.0
    %493 = vmatpush.msra.mxu0 0.0
    %494 = vmatpush.msra.mxu0 0.0
    %495 = vmatpush.msra.mxu0 0.0
    %496 = vmatpush.msra.mxu0 %v218
    %497 = vmatpush.msra.mxu0 %v217
    %498 = vmatpush.msra.mxu0 %v216
    %499 = vmatpush.msra.mxu0 %v215
    %500 = vmatmul.f32.gmra.mxu0 %v482
    %v501 = vpop.f32.mrf.mxu0
    %v502 = vadd.f32 0.0, %v501
    %503 = vdwg.mxu0
    %v504 = vadd.f32 %v222, %v502
    %v505 = vadd.f32 %v504, 3.0
    %v506 = vmul.f32 %v505, %v255
    %v507 = vmax.f32 %v506, 0.0
    %v508 = vmin.f32 %v507, 1.0
    %v509 = vmax.f32 %v504, -1.0
    %v510 = vmin.f32 %v509, 1.0
    %v511 = vmul.f32 %v508, %v471
    %513 = vrot.lane.b32.xlu0 %v510, 64
    %v514 = vpop.permute.xlu0 %513
    %v516 = vmul.f32 %v508, %v514
    %518 = vrot.lane.b32.xlu0 %v516, 32
    %v519 = vpop.permute.xlu0 %518
    %v521 = vadd.f32 %v511, %v519
    %v522 = vmax.f32 %v521, -1.0
    %v523 = vmin.f32 %v522, 1.0
    %525 = vrot.lane.b32.xlu0 %v523, 64
    %v526 = vpop.permute.xlu0 %525
    %v528 = vmul.f32 %v508, %v526
    %530 = vrot.lane.b32.xlu0 %v528, 32
    %v531 = vpop.permute.xlu0 %530
    %v532 = vsel %vm153, %v531, 0
    %534 = vmatpush.msra.mxu0 0.0
    %535 = vmatpush.msra.mxu0 0.0
    %536 = vmatpush.msra.mxu0 0.0
    %537 = vmatpush.msra.mxu0 0.0
    %538 = vmatpush.msra.mxu0 0.0
    %539 = vmatpush.msra.mxu0 0.0
    %540 = vmatpush.msra.mxu0 0.0
    %541 = vmatpush.msra.mxu0 0.0
    %542 = vmatpush.msra.mxu0 0.0
    %543 = vmatpush.msra.mxu0 0.0
    %544 = vmatpush.msra.mxu0 0.0
    %545 = vmatpush.msra.mxu0 0.0
    %546 = vmatpush.msra.mxu0 %v218
    %547 = vmatpush.msra.mxu0 %v217
    %548 = vmatpush.msra.mxu0 %v216
    %549 = vmatpush.msra.mxu0 %v215
    %550 = vmatmul.f32.gmra.mxu0 %v532
    %v551 = vpop.f32.mrf.mxu0
    %v552 = vadd.f32 0.0, %v551
    %553 = vdwg.mxu0
    %v554 = vadd.f32 %v222, %v552
    %v555 = vadd.f32 %v554, 3.0
    %v556 = vmul.f32 %v555, %v255
    %v557 = vmax.f32 %v556, 0.0
    %v558 = vmin.f32 %v557, 1.0
    %v559 = vmax.f32 %v554, -1.0
    %v560 = vmin.f32 %v559, 1.0
    %v561 = vmul.f32 %v558, %v521
    %563 = vrot.lane.b32.xlu0 %v560, 64
    %v564 = vpop.permute.xlu0 %563
    %v566 = vmul.f32 %v558, %v564
    %568 = vrot.lane.b32.xlu0 %v566, 32
    %v569 = vpop.permute.xlu0 %568
    %v571 = vadd.f32 %v561, %v569
    %v572 = vmax.f32 %v571, -1.0
    %v573 = vmin.f32 %v572, 1.0
    %575 = vrot.lane.b32.xlu0 %v573, 64
    %v576 = vpop.permute.xlu0 %575
    %v578 = vmul.f32 %v558, %v576
    %580 = vrot.lane.b32.xlu0 %v578, 32
    %v581 = vpop.permute.xlu0 %580
    %v582 = vsel %vm153, %v581, 0
    %584 = vmatpush.msra.mxu0 0.0
    %585 = vmatpush.msra.mxu0 0.0
    %586 = vmatpush.msra.mxu0 0.0
    %587 = vmatpush.msra.mxu0 0.0
    %588 = vmatpush.msra.mxu0 0.0
    %589 = vmatpush.msra.mxu0 0.0
    %590 = vmatpush.msra.mxu0 0.0
    %591 = vmatpush.msra.mxu0 0.0
    %592 = vmatpush.msra.mxu0 0.0
    %593 = vmatpush.msra.mxu0 0.0
    %594 = vmatpush.msra.mxu0 0.0
    %595 = vmatpush.msra.mxu0 0.0
    %596 = vmatpush.msra.mxu0 %v218
    %597 = vmatpush.msra.mxu0 %v217
    %598 = vmatpush.msra.mxu0 %v216
    %599 = vmatpush.msra.mxu0 %v215
    %600 = vmatmul.f32.gmra.mxu0 %v582
    %v601 = vpop.f32.mrf.mxu0
    %v602 = vadd.f32 0.0, %v601
    %603 = vdwg.mxu0
    %v604 = vadd.f32 %v222, %v602
    %v605 = vadd.f32 %v604, 3.0
    %v606 = vmul.f32 %v605, %v255
    %v607 = vmax.f32 %v606, 0.0
    %v608 = vmin.f32 %v607, 1.0
    %v609 = vmax.f32 %v604, -1.0
    %v610 = vmin.f32 %v609, 1.0
    %v611 = vmul.f32 %v608, %v571
    %613 = vrot.lane.b32.xlu0 %v610, 64
    %v614 = vpop.permute.xlu0 %613
    %v616 = vmul.f32 %v608, %v614
    %618 = vrot.lane.b32.xlu0 %v616, 32
    %v619 = vpop.permute.xlu0 %618
    %v621 = vadd.f32 %v611, %v619
    %v622 = vmax.f32 %v621, -1.0
    %v623 = vmin.f32 %v622, 1.0
    %625 = vrot.lane.b32.xlu0 %v623, 64
    %v626 = vpop.permute.xlu0 %625
    %v628 = vmul.f32 %v608, %v626
    %v629 = vld [vmem:[#allocation13] sm:$0xff]
    %v630 = vld [vmem:[#allocation13 + $0x8] sm:$0xff]
    %v631 = vld [vmem:[#allocation13 + $0x10] sm:$0xff]
    %v632 = vld [vmem:[#allocation13 + $0x18] sm:$0xff]
    %v633 = vld [vmem:[%s10] sm:$0x1]
    %v635 = vperm.slane %v633, 0
    %638 = vrot.lane.b32.xlu0 %v628, 32
    %v639 = vpop.permute.xlu0 %638
    %v640 = vsel %vm153, %v639, 0
    %642 = vmatpush.msra.mxu0 0.0
    %643 = vmatpush.msra.mxu0 0.0
    %644 = vmatpush.msra.mxu0 0.0
    %645 = vmatpush.msra.mxu0 0.0
    %646 = vmatpush.msra.mxu0 0.0
    %647 = vmatpush.msra.mxu0 0.0
    %648 = vmatpush.msra.mxu0 0.0
    %649 = vmatpush.msra.mxu0 0.0
    %650 = vmatpush.msra.mxu0 0.0
    %651 = vmatpush.msra.mxu0 0.0
    %652 = vmatpush.msra.mxu0 0.0
    %653 = vmatpush.msra.mxu0 0.0
    %654 = vmatpush.msra.mxu0 %v632
    %655 = vmatpush.msra.mxu0 %v631
    %656 = vmatpush.msra.mxu0 %v630
    %657 = vmatpush.msra.mxu0 %v629
    %658 = vmatmul.f32.gmra.mxu0 %v282
    %v659 = vpop.f32.mrf.mxu0
    %v660 = vadd.f32 %v635, %v659
    %661 = vmatmul.f32.gmra.mxu0 %v332
    %v662 = vpop.f32.mrf.mxu0
    %v663 = vadd.f32 %v635, %v662
    %664 = vmatmul.f32.gmra.mxu0 %v382
    %v665 = vpop.f32.mrf.mxu0
    %v666 = vadd.f32 %v635, %v665
    %667 = vmatmul.f32.gmra.mxu0 %v432
    %v668 = vpop.f32.mrf.mxu0
    %v669 = vadd.f32 %v635, %v668
    %670 = vmatmul.f32.gmra.mxu0 %v482
    %v671 = vpop.f32.mrf.mxu0
    %v672 = vadd.f32 %v635, %v671
    %673 = vmatmul.f32.gmra.mxu0 %v532
    %v674 = vpop.f32.mrf.mxu0
    %v675 = vadd.f32 %v635, %v674
    %676 = vmatmul.f32.gmra.mxu0 %v582
    %v677 = vpop.f32.mrf.mxu0
    %v678 = vadd.f32 %v635, %v677
    %679 = vmatmul.f32.gmra.mxu0 %v640
    %v680 = vpop.f32.mrf.mxu0
    %v681 = vadd.f32 %v635, %v680
    %682 = vdwg.mxu0
    %683 = vst [vmem:[#allocation14] sm:$0xff] %v660
    %684 = vst [vmem:[#allocation14 + $0x8] sm:$0xff] %v663
    %685 = vst [vmem:[#allocation14 + $0x10] sm:$0xff] %v666
    %686 = vst [vmem:[#allocation14 + $0x18] sm:$0xff] %v669
    %687 = vst [vmem:[#allocation14 + $0x20] sm:$0xff] %v672
    %688 = vst [vmem:[#allocation14 + $0x28] sm:$0xff] %v675
    %689 = vst [vmem:[#allocation14 + $0x30] sm:$0xff] %v678
    %690 = vst [vmem:[#allocation14 + $0x38] sm:$0xff] %v681
    // Predicated region
    $region74: #{tpu_custom_call.1} parent=1 // pred_check
      _
    $region75: #{tpu_custom_call.1} parent=1 // pred_check_branch
      %692 = sbr.rel (0) target = $region77
    $region76: #{tpu_custom_call.1} parent=1 // pred_region
      %694 = vsyncadd [#allocation4], 0
      %s695 = sshll.u32 [#allocation14], 4
      %s696 = int_to_ptr.vmem [resolvable:$true] %s695
      %s697 = sshll.u32 %s11, 4
      %s698 = int_to_ptr.hbm [resolvable:$true] %s697
      %703 = dma.vmem_to_hbm [thread:$0]  %s696, 1024, %s698, [#allocation4], 128, 128, 8
    $region77: #{tpu_custom_call.1} parent=1 // pred_fallthru
      _
    // Predicated region
    $region78: #{tpu_custom_call.1} parent=1 // pred_check
      _
    $region79: #{tpu_custom_call.1} parent=1 // pred_check_branch
      %705 = sbr.rel (0) target = $region81
    $region80: #{tpu_custom_call.1} parent=1 // pred_region
      %707 = dma.done [#allocation4], 1024
    $region81: #{tpu_custom_call.1} parent=1 // pred_fallthru
      _
    %708 = vsyncpa [#allocation3], 1
    %709 = vsyncpa [#allocation6], 1
    %710 = vsyncpa [#allocation9], 1
    %711 = vsyncpa [#allocation12], 1
    %712 = vsyncpa [#allocation4], 1

</llo_original>
